<compile_context>
chip_gen: v6e
topology: v6e:2x2x1
jax: 0.10.0
libtpu: 0.0.40
codegen_flags: <defaults>
</compile_context>

<pallas_src>
import functools

import jax
import jax.numpy as jnp
import numpy as np
from jax import lax
from jax.experimental import pallas as pl
from jax.experimental.pallas import tpu as pltpu

_EPS = 1e-5


def _bf_layernorm_kernel(x_ref, w_ref, o_ref, *, c_true):
    # x_ref: (block_rows, C_pad)   w_ref: (1, C_pad)   o_ref: (block_rows, C_pad)
    x = x_ref[...].astype(jnp.float32)
    w = w_ref[...].astype(jnp.float32)
    c_pad = x.shape[-1]

    if c_pad == c_true:
        # Two-pass variance (unbiased=False). Safer than E[x^2]-mu^2 and the
        # kernel is HBM-bound, so the extra VALU pass is free.
        mu = jnp.mean(x, axis=-1, keepdims=True)
        xc = x - mu
        var = jnp.mean(xc * xc, axis=-1, keepdims=True)
    else:
        # Padded lanes hold zeros; mask them out of the centered-square sum and
        # divide by the true channel count.
        inv_c = jnp.float32(1.0 / c_true)
        lane = lax.broadcasted_iota(jnp.int32, x.shape, dimension=x.ndim - 1)
        valid = lane < c_true
        mu = jnp.sum(x, axis=-1, keepdims=True) * inv_c       # zeros add nothing
        xc = jnp.where(valid, x - mu, 0.0)
        var = jnp.sum(xc * xc, axis=-1, keepdims=True) * inv_c

    inv = lax.rsqrt(var + _EPS)                                # EUP slot, ~free
    # Bias-free LayerNorm: scale the ORIGINAL x (no mean subtraction).
    o_ref[...] = (x * inv * w).astype(o_ref.dtype)


def _pick_block_rows(M, C_pad, itemsize):
    """Row-tile size: ~4 MiB per tile, dtype-aware minimum rows, >= 8 grid steps."""
    # Dtype minimum sublane tile: (8,128) f32, (16,128) bf16, (32,128) int8/fp8.
    if itemsize >= 4:
        min_rows = 8
    elif itemsize == 2:
        min_rows = 16
    else:
        min_rows = 32

    # ~4 MiB tiles: with double-buffered input + output this is ~16 MiB of VMEM,
    # comfortably inside the 32 MiB scoped default on every generation (incl.
    # v7x's 64 MiB physical), yet big enough that the ~0.35 us per-step overhead
    # is <10% of the DMA time even at v7x's 3.2 TB/s.
    target_bytes = 4 * 1024 * 1024
    rows = (target_bytes // (C_pad * itemsize)) // min_rows * min_rows
    rows = max(min_rows, rows)

    # Keep >= 8 grid steps so v7x megacore gives each TensorCore >= 4 pipelined
    # steps (prefetch/writeback overlap compute on both cores).
    rows_for_steps = (pl.cdiv(M, 8) // min_rows) * min_rows
    rows = min(rows, max(min_rows, rows_for_steps))
    return rows


@functools.partial(jax.jit, static_argnames=("block_rows",))
def biasfree_layernorm(x, weight, block_rows=None):
    """x: (..., C), weight: (C,). Bias-free LayerNorm over the last dim."""
    orig_shape = x.shape
    C = int(orig_shape[-1])
    M = int(np.prod(orig_shape[:-1]))
    itemsize = jnp.dtype(x.dtype).itemsize

    # Lane-dense channel axis: pad C to a multiple of 128 (zeros).
    C_pad = ((C + 127) // 128) * 128

    x2 = x.reshape(M, C)
    w2 = weight.reshape(1, C).astype(x.dtype)
    if C_pad != C:
        x2 = jnp.pad(x2, ((0, 0), (0, C_pad - C)))
        w2 = jnp.pad(w2, ((0, 0), (0, C_pad - C)))

    if block_rows is None:
        block_rows = _pick_block_rows(M, C_pad, itemsize)

    # cdiv grid with explicit row padding (zero rows are harmless: var=0 -> no
    # NaN) instead of a divisibility assert / full-array fallback.
    n_blocks = pl.cdiv(M, block_rows)
    M_pad = n_blocks * block_rows
    if M_pad != M:
        x2 = jnp.pad(x2, ((0, M_pad - M), (0, 0)))

    grid = (n_blocks,)
    bytes_accessed = (2 * M_pad * C_pad + C_pad) * itemsize

    kernel = functools.partial(_bf_layernorm_kernel, c_true=C)

    out = pl.pallas_call(
        kernel,
        out_shape=jax.ShapeDtypeStruct((M_pad, C_pad), x.dtype),
        grid_spec=pltpu.PrefetchScalarGridSpec(
            num_scalar_prefetch=0,
            grid=grid,
            in_specs=[
                pl.BlockSpec((block_rows, C_pad), lambda i: (i, 0)),
                pl.BlockSpec((1, C_pad), lambda i: (0, 0)),   # weight, resident
            ],
            out_specs=pl.BlockSpec((block_rows, C_pad), lambda i: (i, 0)),
        ),
        compiler_params=pltpu.CompilerParams(
            dimension_semantics=("parallel",)),
        cost_estimate=pl.CostEstimate(
            flops=6 * M_pad * C_pad,   # sub, sq, 2 lane-reductions, scale, weight
            transcendentals=M_pad,     # one rsqrt per row
            bytes_accessed=bytes_accessed),
    )(x2, w2)

    out = out[:M, :C].reshape(orig_shape)
    return out


def _reference(x, weight, eps=_EPS):
    xf = x.astype(jnp.float32)
    sigma = jnp.var(xf, axis=-1, keepdims=True)          # ddof=0 == unbiased=False
    return (xf / jnp.sqrt(sigma + eps) * weight.astype(jnp.float32)).astype(x.dtype)


if __name__ == "__main__":
    key = jax.random.PRNGKey(0)

    # Case 1 (main): Restormer token layout (B, H*W, C) with lane-dense C=128.
    B, HW, C = 2, 16 * 16, 128
    k1, k2, k3, k4 = jax.random.split(key, 4)
    x = jax.random.normal(k1, (B, HW, C), dtype=jnp.float32)
    w = 1.0 + 0.1 * jax.random.normal(k2, (C,), dtype=jnp.float32)
    out = jax.block_until_ready(biasfree_layernorm(x, w))
    ref = jax.block_until_ready(_reference(x, w))
    assert out.shape == x.shape
    np.testing.assert_allclose(np.asarray(out), np.asarray(ref), rtol=1e-5, atol=1e-5)

    # Case 2: non-multiple-of-128 channels (real Restormer width, C=48) ->
    # exercises lane padding + masked variance + cdiv row padding.
    B2, HW2, C2 = 1, 8 * 8, 48
    x2 = jax.random.normal(k3, (B2, HW2, C2), dtype=jnp.float32)
    w2 = 1.0 + 0.1 * jax.random.normal(k4, (C2,), dtype=jnp.float32)
    out2 = jax.block_until_ready(biasfree_layernorm(x2, w2))
    ref2 = jax.block_until_ready(_reference(x2, w2))
    assert out2.shape == x2.shape
    np.testing.assert_allclose(np.asarray(out2), np.asarray(ref2), rtol=1e-5, atol=1e-5)

    # Case 3: bf16 input -> exercises the dtype-aware (16,128) minimum tile.
    xb = x.astype(jnp.bfloat16)
    wb = w.astype(jnp.bfloat16)
    outb = jax.block_until_ready(biasfree_layernorm(xb, wb))
    refb = jax.block_until_ready(_reference(xb, wb))
    assert outb.shape == xb.shape
    np.testing.assert_allclose(np.asarray(outb, dtype=np.float32),
                               np.asarray(refb, dtype=np.float32),
                               rtol=2e-2, atol=2e-2)

    print("KERNEL_OK")
</pallas_src>

<mosaic_0001>
module attributes {stable_mosaic.version = 11 : i64} {
  func.func @_bf_layernorm_kernel(%arg0: i32, %arg1: memref<64x128xf32, #tpu.memory_space<vmem>>, %arg2: memref<1x128xf32, #tpu.memory_space<vmem>>, %arg3: memref<64x128xf32, #tpu.memory_space<vmem>>) attributes {dimension_semantics = [#tpu.dimension_semantics<parallel>], iteration_bounds = array<i64: 8>, scalar_prefetch = 0 : i64, scratch_operands = 0 : i64, tpu.core_type = #tpu.core_type<tc>, window_params = [{transform_indices = @transform_0, window_bounds = array<i64: 64, 128>}, {pipeline_mode = #tpu.pipeline_mode<synchronous>, transform_indices = @transform_1, window_bounds = array<i64: 1, 128>}, {transform_indices = @transform_2, window_bounds = array<i64: 64, 128>}]} {
    %c0 = arith.constant 0 : index
    %c0_0 = arith.constant 0 : index
    %0 = vector.load %arg1[%c0, %c0_0] : memref<64x128xf32, #tpu.memory_space<vmem>>, vector<64x128xf32>
    %c0_1 = arith.constant 0 : index
    %c0_2 = arith.constant 0 : index
    %1 = vector.load %arg2[%c0_1, %c0_2] : memref<1x128xf32, #tpu.memory_space<vmem>>, vector<1x128xf32>
    %cst = arith.constant dense<0.000000e+00> : vector<64xf32>
    %2 = vector.multi_reduction <add>, %0, %cst [1] : vector<64x128xf32> to vector<64xf32>
    %3 = vector.shape_cast %2 : vector<64xf32> to vector<64x1xf32>
    %cst_3 = arith.constant 1.280000e+02 : f32
    %4 = vector.broadcast %cst_3 : f32 to vector<64x1xf32>
    %5 = arith.divf %3, %4 : vector<64x1xf32>
    %6 = vector.broadcast %5 : vector<64x1xf32> to vector<64x128xf32>
    %7 = arith.subf %0, %6 : vector<64x128xf32>
    %8 = arith.mulf %7, %7 : vector<64x128xf32>
    %cst_4 = arith.constant dense<0.000000e+00> : vector<64xf32>
    %9 = vector.multi_reduction <add>, %8, %cst_4 [1] : vector<64x128xf32> to vector<64xf32>
    %10 = vector.shape_cast %9 : vector<64xf32> to vector<64x1xf32>
    %cst_5 = arith.constant 1.280000e+02 : f32
    %11 = vector.broadcast %cst_5 : f32 to vector<64x1xf32>
    %12 = arith.divf %10, %11 : vector<64x1xf32>
    %cst_6 = arith.constant 9.99999974E-6 : f32
    %13 = vector.broadcast %cst_6 : f32 to vector<64x1xf32>
    %14 = arith.addf %12, %13 : vector<64x1xf32>
    %15 = math.rsqrt %14 : vector<64x1xf32>
    %16 = vector.broadcast %15 : vector<64x1xf32> to vector<64x128xf32>
    %17 = arith.mulf %0, %16 : vector<64x128xf32>
    %18 = vector.broadcast %1 : vector<1x128xf32> to vector<64x128xf32>
    %19 = arith.mulf %17, %18 : vector<64x128xf32>
    %c0_7 = arith.constant 0 : index
    %c0_8 = arith.constant 0 : index
    %20 = vector.load %arg3[%c0_7, %c0_8] : memref<64x128xf32, #tpu.memory_space<vmem>>, vector<64x128xf32>
    tpu.vector_store %arg3[%c0_7, %c0_8], %19 {strides = array<i32>} : memref<64x128xf32, #tpu.memory_space<vmem>>, vector<64x128xf32>,
    return
  }
  func.func @transform_0(%arg0: i32) -> (i32, i32) {
    %c0_i32 = arith.constant 0 : i32
    %c0_i32_0 = arith.constant 0 : i32
    return %arg0, %c0_i32 : i32, i32
  }
  func.func @transform_1(%arg0: i32) -> (i32, i32) {
    %c0_i32 = arith.constant 0 : i32
    %c0_i32_0 = arith.constant 0 : i32
    %c0_i32_1 = arith.constant 0 : i32
    return %c0_i32, %c0_i32_0 : i32, i32
  }
  func.func @transform_2(%arg0: i32) -> (i32, i32) {
    %c0_i32 = arith.constant 0 : i32
    %c0_i32_0 = arith.constant 0 : i32
    return %arg0, %c0_i32 : i32, i32
  }
}

</mosaic_0001>

<llo_original>
// kernel: biasfree_layernorm.1
$region0: #{biasfree_layernorm.1}
  #allocation0 [shape = 'u32[]', space=smem, size = 0x4, offset = 0x4, fixed_abs, tag = 'smem constant byte address 0x4 - core index']
  #allocation1 [shape = 'u32[144,128]{1,0:T(1,128)}', space=vmem, size = 0x12000, scoped, tag = 'internal scratch']
  %s0 = inlined_call_operand.hbm [shape: f32[512,128], index: 0, kind: input, shape index: {}]
  %s1 = inlined_call_operand.vmem [shape: f32[1,128], index: 1, kind: input, shape index: {}]
  %s2 = inlined_call_operand.hbm [shape: f32[512,128], index: 2, kind: output, shape index: {}]
  %s3 = sld [smem:[#allocation0]]
  $region45: #{biasfree_layernorm.1} parent=0
    _
  %s5 = ssub.s32 1, %s3
  %s6 = scalar_select 0, %s5, %s3
  $region1: #{biasfree_layernorm.1} parent=0
    #allocation2 [shape = 'u8[65536]{0}', space=vmem, size = 0x10000, scoped, tag = 'input window, operand 0']
    #allocation3 [shape = 's32[2]{0}', space=sflag, size = 0x8, scoped, tag = 'scoped memory for biasfree_layernorm.1']
    #allocation4 [shape = 's32[2]{0}', space=sflag, size = 0x8, scoped, tag = 'scoped memory for biasfree_layernorm.1']
    #allocation5 [shape = 'u8[65536]{0}', space=vmem, size = 0x10000, scoped, tag = 'output window, operand 0']
    %7 = vsyncpa [#allocation3], 0
    %s8 = scalar_lea.sflag [#allocation3], 1
    %9 = vsyncpa %s8, 0
    %10 = vsyncpa [#allocation4], 0
    %s11 = scalar_lea.sflag [#allocation4], 1
    %12 = vsyncpa %s11, 0
    loop: start=0, step=1, limit=10
    $region2: #{biasfree_layernorm.1} parent=1 // loop_pre_header
      _
    $region3: #{biasfree_layernorm.1} parent=1 // loop_header
      %s14 = sphi 0, %s18
      %p15 = scmp.ge.s32.totalorder %s14, 10
      %s24 = sphi 0, %s26
      %s27 = sphi 0, %s24
      %s28 = sphi 0, %s27
      %s44 = sphi 0, %s28
      %s48 = sphi 0, %s48
      %s50 = sphi 0, %s48
      %s51 = sphi 0, %s50
      %s65 = sphi 0, %s51
      %s71 = sphi 0, %s73
      %s74 = sphi 0, %s71
      %s75 = sphi 0, %s74
      %s91 = sphi 0, %s75
    $region4: #{biasfree_layernorm.1} parent=1 // loop_header_branch
      %17 = sbr.rel (%p15) target = $region8
    $region5: #{biasfree_layernorm.1} parent=1 // loop_body
      %s19 = ssub.s32 %s14, 1
      %s20 = ssub.s32 %s14, 2
      %s21 = sadd.s32 %s14, 1
      %s22 = ssub.s32 %s14, %s21
      %p23 = scmp.eq.s32.totalorder %s22, 0
      %s25 = sadd.s32 %s24, 1
      %s26 = scalar_select %p23, %s24, %s25
      %p29 = pneg %p23
      %p30 = scmp.eq.s32.totalorder %s14, 7
      %p31 = por %p29, %p30
      %p32 = scmp.ne.s32.totalorder %s24, %s27
      %p33 = scmp.eq.s32.totalorder %s14, 0
      %p34 = por %p32, %p33
      %p35 = scmp.ne.s32.totalorder %s24, %s27
      %p36 = scmp.eq.s32.totalorder %s19, 7
      %p37 = por %p35, %p36
      %p38 = scmp.ne.s32.totalorder %s27, %s28
      %p39 = scmp.eq.s32.totalorder %s19, 0
      %p40 = por %p38, %p39
      %p41 = scmp.ne.s32.totalorder %s27, %s28
      %p42 = scmp.eq.s32.totalorder %s20, 7
      %p43 = por %p41, %p42
      %p45 = scmp.ne.s32.totalorder %s28, %s44
      %p46 = scmp.eq.s32.totalorder %s20, 0
      %p47 = por %p45, %p46
      %s49 = sadd.s32 %s48, 1
      %p52 = scmp.eq.s32.totalorder %s14, 7
      %p53 = scmp.ne.s32.totalorder %s48, %s50
      %p54 = scmp.eq.s32.totalorder %s14, 0
      %p55 = por %p53, %p54
      %p56 = scmp.ne.s32.totalorder %s48, %s50
      %p57 = scmp.eq.s32.totalorder %s19, 7
      %p58 = por %p56, %p57
      %p59 = scmp.ne.s32.totalorder %s50, %s51
      %p60 = scmp.eq.s32.totalorder %s19, 0
      %p61 = por %p59, %p60
      %p62 = scmp.ne.s32.totalorder %s50, %s51
      %p63 = scmp.eq.s32.totalorder %s20, 7
      %p64 = por %p62, %p63
      %p66 = scmp.ne.s32.totalorder %s51, %s65
      %p67 = scmp.eq.s32.totalorder %s20, 0
      %p68 = por %p66, %p67
      %s69 = ssub.s32 %s14, %s21
      %p70 = scmp.eq.s32.totalorder %s69, 0
      %s72 = sadd.s32 %s71, 1
      %s73 = scalar_select %p70, %s71, %s72
      %p76 = pneg %p70
      %p77 = scmp.eq.s32.totalorder %s14, 7
      %p78 = por %p76, %p77
      %p79 = scmp.ne.s32.totalorder %s71, %s74
      %p80 = scmp.eq.s32.totalorder %s14, 0
      %p81 = por %p79, %p80
      %p82 = scmp.ne.s32.totalorder %s71, %s74
      %p83 = scmp.eq.s32.totalorder %s19, 7
      %p84 = por %p82, %p83
      %p85 = scmp.ne.s32.totalorder %s74, %s75
      %p86 = scmp.eq.s32.totalorder %s19, 0
      %p87 = por %p85, %p86
      %p88 = scmp.ne.s32.totalorder %s74, %s75
      %p89 = scmp.eq.s32.totalorder %s20, 7
      %p90 = por %p88, %p89
      %p92 = scmp.ne.s32.totalorder %s75, %s91
      %p93 = scmp.eq.s32.totalorder %s20, 0
      %p94 = por %p92, %p93
      %p95 = scmp.le.s32.totalorder 1, %s14
      %p96 = scmp.lt.s32.totalorder %s14, 9
      %p97 = pnand %p95, %p96
      %p98 = pneg %p97
      // Predicated region
      $region9: #{biasfree_layernorm.1} parent=5 // pred_check
        _
      $region10: #{biasfree_layernorm.1} parent=5 // pred_check_branch
        %100 = sbr.rel (%p97) target = $region12
      $region11: #{biasfree_layernorm.1} parent=5 // pred_region
        %s101 = ssub.s32 %s14, 1
        // Predicated region
        $region13: #{biasfree_layernorm.1} parent=11 // pred_check
          %p102 = pneg %p61
        $region14: #{biasfree_layernorm.1} parent=11 // pred_check_branch
          %104 = sbr.rel (%p102) target = $region16
        $region15: #{biasfree_layernorm.1} parent=11 // pred_region
          _
        $region16: #{biasfree_layernorm.1} parent=11 // pred_fallthru
          _
      $region12: #{biasfree_layernorm.1} parent=5 // pred_fallthru
        _
      %p105 = scmp.lt.s32.totalorder %s14, 8
      // Predicated region
      $region17: #{biasfree_layernorm.1} parent=5 // pred_check
        %p106 = pneg %p105
      $region18: #{biasfree_layernorm.1} parent=5 // pred_check_branch
        %108 = sbr.rel (%p106) target = $region20
      $region19: #{biasfree_layernorm.1} parent=5 // pred_region
        // Predicated region
        $region21: #{biasfree_layernorm.1} parent=19 // pred_check
          %p109 = pneg %p34
        $region22: #{biasfree_layernorm.1} parent=19 // pred_check_branch
          %111 = sbr.rel (%p109) target = $region24
        $region23: #{biasfree_layernorm.1} parent=19 // pred_region
          %s112 = sand.u32 %s24, 1
          %s113 = scalar_lea.sflag [#allocation3], %s112
          %s114 = sand.u32 %s24, 1
          %s115 = smul.addr %s114, 64
          %s116 = scalar_lea.vmem [#allocation2], %s115
          %s117 = smul.u32 8, %s14
          %s119 = ssub.s32 1024, 1024
          %120 = vsyncadd %s113, %s119
          %s121 = smul.addr %s117, 128
          %s122 = scalar_lea.hbm %s0, %s121
          %s123 = sshll.u32 %s116, 4
          %s124 = int_to_ptr.vmem [resolvable:$true] %s123
          %129 = dma.hbm_to_vmem [thread:$0]  %s122, 1024, %s124, %s113, 128, 128, 8
        $region24: #{biasfree_layernorm.1} parent=19 // pred_fallthru
          _
      $region20: #{biasfree_layernorm.1} parent=5 // pred_fallthru
        _
      %p130 = scmp.le.s32.totalorder 1, %s14
      %p131 = scmp.lt.s32.totalorder %s14, 9
      %p132 = pnand %p130, %p131
      %p133 = pneg %p132
      // Predicated region
      $region25: #{biasfree_layernorm.1} parent=5 // pred_check
        _
      $region26: #{biasfree_layernorm.1} parent=5 // pred_check_branch
        %135 = sbr.rel (%p132) target = $region28
      $region27: #{biasfree_layernorm.1} parent=5 // pred_region
        %s136 = ssub.s32 %s14, 1
        %s137 = sand.u32 %s27, 1
        %s138 = scalar_lea.sflag [#allocation3], %s137
        %s139 = sand.u32 %s27, 1
        %s140 = smul.addr %s139, 64
        %s141 = scalar_lea.vmem [#allocation2], %s140
        // Predicated region
        $region29: #{biasfree_layernorm.1} parent=27 // pred_check
          %p142 = pneg %p40
        $region30: #{biasfree_layernorm.1} parent=27 // pred_check_branch
          %144 = sbr.rel (%p142) target = $region32
        $region31: #{biasfree_layernorm.1} parent=27 // pred_region
          %145 = dma.done %s138, 1024
        $region32: #{biasfree_layernorm.1} parent=27 // pred_fallthru
          _
        %s146 = sand.u32 %s27, 1
        %s147 = scalar_lea.sflag [#allocation3], %s146
        %s148 = sand.u32 %s27, 1
        %s149 = smul.addr %s148, 64
        %s150 = scalar_lea.vmem [#allocation2], %s149
        %p151 = pneg %p40
        %p152 = pneg %p37
        %p153 = pneg %p61
        %p154 = pneg %p58
        %p155 = pneg %p87
        %p156 = pneg %p84
        %s157 = sand.u32 %s74, 1
        %s158 = scalar_lea.sflag [#allocation4], %s157
        %s159 = sand.u32 %s74, 1
        %s160 = smul.addr %s159, 64
        %s161 = scalar_lea.vmem [#allocation5], %s160
        %s162 = smul.u32 8, %s19
        %s163 = smul.u32 8, %s19
        %v164 = vld [vmem:[%s141] sm:$0xff]
        %v165 = vld [vmem:[%s141 + $0x8] sm:$0xff]
        %v166 = vld [vmem:[%s141 + $0x10] sm:$0xff]
        %v167 = vld [vmem:[%s141 + $0x18] sm:$0xff]
        %v168 = vld [vmem:[%s141 + $0x20] sm:$0xff]
        %v169 = vld [vmem:[%s141 + $0x28] sm:$0xff]
        %v170 = vld [vmem:[%s141 + $0x30] sm:$0xff]
        %v171 = vld [vmem:[%s141 + $0x38] sm:$0xff]
        %v172 = vld [vmem:[%s1] sm:$0x1]
        %173 = vadd.xlane.f32.xlu0 %v164
        %v174 = vpop.xlane.xlu0 %173
        %175 = vadd.xlane.f32.xlu0 %v165
        %v176 = vpop.xlane.xlu0 %175
        %177 = vadd.xlane.f32.xlu0 %v166
        %v178 = vpop.xlane.xlu0 %177
        %179 = vadd.xlane.f32.xlu0 %v167
        %v180 = vpop.xlane.xlu0 %179
        %181 = vadd.xlane.f32.xlu0 %v168
        %v182 = vpop.xlane.xlu0 %181
        %183 = vadd.xlane.f32.xlu0 %v169
        %v184 = vpop.xlane.xlu0 %183
        %185 = vadd.xlane.f32.xlu0 %v170
        %v186 = vpop.xlane.xlu0 %185
        %187 = vadd.xlane.f32.xlu0 %v171
        %v188 = vpop.xlane.xlu0 %187
        %v189 = vrcp.pop 128.0
        %v190 = vmul.f32 %v174, %v189
        %v191 = vmul.f32 %v176, %v189
        %v192 = vmul.f32 %v178, %v189
        %v193 = vmul.f32 %v180, %v189
        %v194 = vmul.f32 %v182, %v189
        %v195 = vmul.f32 %v184, %v189
        %v196 = vmul.f32 %v186, %v189
        %v197 = vmul.f32 %v188, %v189
        %v198 = vsub.f32 %v164, %v190
        %v199 = vsub.f32 %v165, %v191
        %v200 = vsub.f32 %v166, %v192
        %v201 = vsub.f32 %v167, %v193
        %v202 = vsub.f32 %v168, %v194
        %v203 = vsub.f32 %v169, %v195
        %v204 = vsub.f32 %v170, %v196
        %v205 = vsub.f32 %v171, %v197
        %v206 = vmul.f32 %v198, %v198
        %v207 = vmul.f32 %v199, %v199
        %v208 = vmul.f32 %v200, %v200
        %v209 = vmul.f32 %v201, %v201
        %v210 = vmul.f32 %v202, %v202
        %v211 = vmul.f32 %v203, %v203
        %v212 = vmul.f32 %v204, %v204
        %v213 = vmul.f32 %v205, %v205
        %214 = vadd.xlane.f32.xlu0 %v206
        %v215 = vpop.xlane.xlu0 %214
        %216 = vadd.xlane.f32.xlu0 %v207
        %v217 = vpop.xlane.xlu0 %216
        %218 = vadd.xlane.f32.xlu0 %v208
        %v219 = vpop.xlane.xlu0 %218
        %220 = vadd.xlane.f32.xlu0 %v209
        %v221 = vpop.xlane.xlu0 %220
        %222 = vadd.xlane.f32.xlu0 %v210
        %v223 = vpop.xlane.xlu0 %222
        %224 = vadd.xlane.f32.xlu0 %v211
        %v225 = vpop.xlane.xlu0 %224
        %226 = vadd.xlane.f32.xlu0 %v212
        %v227 = vpop.xlane.xlu0 %226
        %228 = vadd.xlane.f32.xlu0 %v213
        %v229 = vpop.xlane.xlu0 %228
        %v230 = vmul.f32 %v215, %v189
        %v231 = vmul.f32 %v217, %v189
        %v232 = vmul.f32 %v219, %v189
        %v233 = vmul.f32 %v221, %v189
        %v234 = vmul.f32 %v223, %v189
        %v235 = vmul.f32 %v225, %v189
        %v236 = vmul.f32 %v227, %v189
        %v237 = vmul.f32 %v229, %v189
        %v238 = vadd.f32 %v230, 1e-05
        %v239 = vadd.f32 %v231, 1e-05
        %v240 = vadd.f32 %v232, 1e-05
        %v241 = vadd.f32 %v233, 1e-05
        %v242 = vadd.f32 %v234, 1e-05
        %v243 = vadd.f32 %v235, 1e-05
        %v244 = vadd.f32 %v236, 1e-05
        %v245 = vadd.f32 %v237, 1e-05
        %v246 = vrsqrt.pop %v238
        %v247 = vrsqrt.pop %v239
        %v248 = vrsqrt.pop %v240
        %v249 = vrsqrt.pop %v241
        %v250 = vrsqrt.pop %v242
        %v251 = vrsqrt.pop %v243
        %v252 = vrsqrt.pop %v244
        %v253 = vrsqrt.pop %v245
        %v254 = vmul.f32 %v164, %v246
        %v255 = vmul.f32 %v165, %v247
        %v256 = vmul.f32 %v166, %v248
        %v257 = vmul.f32 %v167, %v249
        %v258 = vmul.f32 %v168, %v250
        %v259 = vmul.f32 %v169, %v251
        %v260 = vmul.f32 %v170, %v252
        %v261 = vmul.f32 %v171, %v253
        %v263 = vlaneseq
        %v264 = vshrl.u32 %v263, 7
        %v265 = vsub.s32 0, %v264
        %v266 = vrot.slane %v172, %v265
        %v268 = vmul.f32 %v254, %v266
        %v269 = vmul.f32 %v255, %v266
        %v270 = vmul.f32 %v256, %v266
        %v271 = vmul.f32 %v257, %v266
        %v272 = vmul.f32 %v258, %v266
        %v273 = vmul.f32 %v259, %v266
        %v274 = vmul.f32 %v260, %v266
        %v275 = vmul.f32 %v261, %v266
        %276 = vst [vmem:[%s161] sm:$0xff] %v268
        %277 = vst [vmem:[%s161 + $0x8] sm:$0xff] %v269
        %278 = vst [vmem:[%s161 + $0x10] sm:$0xff] %v270
        %279 = vst [vmem:[%s161 + $0x18] sm:$0xff] %v271
        %280 = vst [vmem:[%s161 + $0x20] sm:$0xff] %v272
        %281 = vst [vmem:[%s161 + $0x28] sm:$0xff] %v273
        %282 = vst [vmem:[%s161 + $0x30] sm:$0xff] %v274
        %283 = vst [vmem:[%s161 + $0x38] sm:$0xff] %v275
        %s284 = sand.u32 %s74, 1
        %s285 = scalar_lea.sflag [#allocation4], %s284
        %s286 = sand.u32 %s74, 1
        %s287 = smul.addr %s286, 64
        %s288 = scalar_lea.vmem [#allocation5], %s287
        // Predicated region
        $region33: #{biasfree_layernorm.1} parent=27 // pred_check
          %p289 = pneg %p84
        $region34: #{biasfree_layernorm.1} parent=27 // pred_check_branch
          %291 = sbr.rel (%p289) target = $region36
        $region35: #{biasfree_layernorm.1} parent=27 // pred_region
          %s292 = smul.u32 8, %s19
          %s294 = ssub.s32 1024, 1024
          %295 = vsyncadd %s285, %s294
          %s296 = smul.addr %s292, 128
          %s297 = scalar_lea.hbm %s2, %s296
          %s298 = sshll.u32 %s288, 4
          %s299 = int_to_ptr.vmem [resolvable:$true] %s298
          %304 = dma.vmem_to_hbm [thread:$0]  %s299, 1024, %s297, %s285, 128, 128, 8
        $region36: #{biasfree_layernorm.1} parent=27 // pred_fallthru
          _
      $region28: #{biasfree_layernorm.1} parent=5 // pred_fallthru
        _
      %p305 = scmp.le.s32.totalorder 2, %s14
      // Predicated region
      $region37: #{biasfree_layernorm.1} parent=5 // pred_check
        %p306 = pneg %p305
      $region38: #{biasfree_layernorm.1} parent=5 // pred_check_branch
        %308 = sbr.rel (%p306) target = $region40
      $region39: #{biasfree_layernorm.1} parent=5 // pred_region
        %s309 = ssub.s32 %s14, 2
        // Predicated region
        $region41: #{biasfree_layernorm.1} parent=39 // pred_check
          %p310 = pneg %p90
        $region42: #{biasfree_layernorm.1} parent=39 // pred_check_branch
          %312 = sbr.rel (%p310) target = $region44
        $region43: #{biasfree_layernorm.1} parent=39 // pred_region
          %s313 = sand.u32 %s75, 1
          %s314 = scalar_lea.sflag [#allocation4], %s313
          %s315 = sand.u32 %s75, 1
          %s316 = smul.addr %s315, 64
          %s317 = scalar_lea.vmem [#allocation5], %s316
          %318 = dma.done %s314, 1024
        $region44: #{biasfree_layernorm.1} parent=39 // pred_fallthru
          _
      $region40: #{biasfree_layernorm.1} parent=5 // pred_fallthru
        _
    $region6: #{biasfree_layernorm.1} parent=1 // loop_footer
      %s18 = sadd.s32 1, %s14
    $region7: #{biasfree_layernorm.1} parent=1 // loop_footer_branch
      %13 = sbr.rel target = $region3
    $region8: #{biasfree_layernorm.1} parent=1 // loop_exit
      _
    %319 = vsyncpa [#allocation3], 1
    %s320 = scalar_lea.sflag [#allocation3], 1
    %321 = vsyncpa %s320, 1
    %322 = vsyncpa [#allocation4], 1
    %s323 = scalar_lea.sflag [#allocation4], 1
    %324 = vsyncpa %s323, 1

</llo_original>
